<compile_context>
chip_gen: v5e
topology: v5e:2x2
jax: 0.10.0
libtpu: 0.0.40
codegen_flags: <defaults>
</compile_context>

<pallas_src>
import functools

import jax
import jax.numpy as jnp
from jax.experimental import pallas as pl
from jax.experimental.pallas import tpu as pltpu

LAMBDA_NOOBJ = 10.0
LAMBDA_COORD = 10.0
LAMBDA_OBJ = 1.0
LAMBDA_CLASS = 1.0


def _round_up(x, m):
    return ((x + m - 1) // m) * m


def _device_kind():
    try:
        return jax.devices()[0].device_kind.lower()
    except Exception:  # pragma: no cover - detection best-effort only
        return ""


def _yolo_loss_kernel(aw_ref, ah_ref, iaw_ref, iah_ref,          # SMEM scalar prefetch
                      pred_ref, tgt_ref,                          # (F,tile_r,128),(6,tile_r,128)
                      out_ref,                                    # (1,4,sub_rows,128) f32
                      noobj_acc, boxobj_acc, ce_acc, cnt_acc,     # (sub_rows,128) f32 scratch
                      *, num_classes, blocks_per_chunk, tile_r, sub_rows):
    bj = pl.program_id(1)

    @pl.when(bj == 0)
    def _():
        noobj_acc[...] = jnp.zeros_like(noobj_acc)
        boxobj_acc[...] = jnp.zeros_like(boxobj_acc)
        ce_acc[...] = jnp.zeros_like(ce_acc)
        cnt_acc[...] = jnp.zeros_like(cnt_acc)

    # One anchor per grid block -> scalar reads from SMEM (outside the loop).
    flat = pl.program_id(0) * blocks_per_chunk + bj
    aw = aw_ref[flat]
    ah = ah_ref[flat]
    iaw = iaw_ref[flat]
    iah = iah_ref[flat]

    f32 = jnp.float32
    n_sub = tile_r // sub_rows

    # Strip-mine the (tile_r,128) block into dtype-tile-aligned sub-slabs so
    # the ~25 live elementwise temporaries stay within the 64-vreg file even
    # when the DMA block is large.
    @pl.loop(0, n_sub)
    def _(si):
        r0 = pl.multiple_of(si * sub_rows, sub_rows)
        rows = pl.ds(r0, sub_rows)

        t0 = tgt_ref[0, rows, :].astype(f32)
        obj = t0 == 1.0
        noobj = t0 == 0.0
        zeros = jnp.zeros_like(t0)

        # ---- no-object loss: BCEWithLogits(p0, t0) summed over noobj cells.
        # Reuse e = exp(-|p0|) both for the log1p term and for sigmoid(p0)
        # (saves one EUP exp per element).
        p0 = pred_ref[0, rows, :].astype(f32)
        e = jnp.exp(-jnp.abs(p0))
        inv1pe = pl.reciprocal(1.0 + e, approx=True)
        sig_p0 = jnp.where(p0 >= 0.0, inv1pe, e * inv1pe)
        bce = jnp.maximum(p0, 0.0) - p0 * t0 + jnp.log1p(e)
        noobj_acc[...] += jnp.where(noobj, bce, zeros)

        # ---- decode predicted box.
        sx = jax.nn.sigmoid(pred_ref[1, rows, :].astype(f32))
        sy = jax.nn.sigmoid(pred_ref[2, rows, :].astype(f32))
        pw_raw = pred_ref[3, rows, :].astype(f32)
        ph_raw = pred_ref[4, rows, :].astype(f32)
        pw = jnp.exp(pw_raw) * aw
        ph = jnp.exp(ph_raw) * ah

        tx = tgt_ref[1, rows, :].astype(f32)
        ty = tgt_ref[2, rows, :].astype(f32)
        tw = tgt_ref[3, rows, :].astype(f32)
        th = tgt_ref[4, rows, :].astype(f32)

        # ---- midpoint-format IoU.
        b1x1 = sx - pw * 0.5; b1x2 = sx + pw * 0.5
        b1y1 = sy - ph * 0.5; b1y2 = sy + ph * 0.5
        b2x1 = tx - tw * 0.5; b2x2 = tx + tw * 0.5
        b2y1 = ty - th * 0.5; b2y2 = ty + th * 0.5
        iw = jnp.maximum(jnp.minimum(b1x2, b2x2) - jnp.maximum(b1x1, b2x1), 0.0)
        ih = jnp.maximum(jnp.minimum(b1y2, b2y2) - jnp.maximum(b1y1, b2y1), 0.0)
        inter = iw * ih
        area1 = jnp.abs((b1x2 - b1x1) * (b1y2 - b1y1))
        area2 = jnp.abs((b2x2 - b2x1) * (b2y2 - b2y1))
        ious = inter * pl.reciprocal(area1 + area2 - inter + 1e-6, approx=True)

        # ---- objectness MSE (obj cells) + box MSE (obj cells), folded with
        # their lambdas into a single accumulator.  where-SELECT (not multiply)
        # so any inf/nan from exp overflow on non-obj/pad rows cannot leak in.
        obj_mse = (sig_p0 - ious * t0) ** 2
        lw = jnp.log(1e-6 + tw * iaw)
        lh = jnp.log(1e-6 + th * iah)
        box_sq = ((sx - tx) ** 2 + (sy - ty) ** 2 +
                  (pw_raw - lw) ** 2 + (ph_raw - lh) ** 2)
        boxobj_acc[...] += jnp.where(
            obj, LAMBDA_COORD * box_sq + LAMBDA_OBJ * obj_mse, zeros)

        # ---- class cross-entropy, summed over obj cells (mean in wrapper).
        # Unrolled over the (static) class count -> pure element-wise work.
        label = tgt_ref[5, rows, :].astype(jnp.int32)
        lmax = pred_ref[5, rows, :].astype(f32)
        for c in range(1, num_classes):
            lmax = jnp.maximum(lmax, pred_ref[5 + c, rows, :].astype(f32))
        sexp = jnp.zeros_like(lmax)
        picked = jnp.zeros_like(lmax)
        for c in range(num_classes):
            lc = pred_ref[5 + c, rows, :].astype(f32)
            sexp = sexp + jnp.exp(lc - lmax)
            picked = jnp.where(label == c, lc, picked)   # select-overwrite
        ce = lmax + jnp.log(sexp) - picked
        ce_acc[...] += jnp.where(obj, ce, zeros)

        # ---- object count (for the CE mean and the "no objects" branch).
        cnt_acc[...] += jnp.where(obj, jnp.ones_like(t0), zeros)

    # Write the four tiny accumulator slabs once per chunk; wrapper does one
    # microscopic reduce (replaces five full-size output arrays + reduces).
    @pl.when(bj == pl.num_programs(1) - 1)
    def _():
        out_ref[0, 0] = noobj_acc[...]
        out_ref[0, 1] = boxobj_acc[...]
        out_ref[0, 2] = ce_acc[...]
        out_ref[0, 3] = cnt_acc[...]


def yolov3_loss(pred, target, anchor, *, tile_rows=None, num_chunks=None,
                io_dtype=jnp.bfloat16, input_buffering=2):
    """pred: (N, 3, S, S, 5+C); target: (N, 3, S, S, 6); anchor: (3, 2)."""
    N, A, S1, S2, F = pred.shape
    C = F - 5
    rows_per_anchor = N * S1 * S2

    kind = _device_kind()
    is_v7 = ("v7" in kind) or ("7x" in kind)

    # One grid "chunk" per TensorCore: 2 on v7x, 1 on v5e/v6e (avoids dead
    # padded blocks on single-TC chips).
    if num_chunks is None:
        num_chunks = 2 if is_v7 else 1

    pred_dtype = jnp.dtype(io_dtype)
    # bf16 keeps class labels exact only up to 256 classes.
    tgt_dtype = jnp.dtype(io_dtype) if C <= 256 else jnp.dtype(jnp.float32)
    itemsize = min(pred_dtype.itemsize, tgt_dtype.itemsize)
    sub_rows = 8 * (4 // itemsize)            # 8 rows f32, 16 rows bf16

    # ---- tile size from a per-generation VMEM budget (v7x: 64 MiB phys /
    # 32 MiB default scoped; v5e/v6e: 128 MiB phys).
    vmem_budget = (20 if is_v7 else 56) * (1 << 20)
    vmem_limit = (30 if is_v7 else 80) * (1 << 20)
    bufs = max(2, int(input_buffering))
    per_rowgroup_bytes = 128 * (F * pred_dtype.itemsize + 6 * tgt_dtype.itemsize)
    if tile_rows is None:
        tile_r = vmem_budget // (bufs * per_rowgroup_bytes)
    else:
        tile_r = int(tile_rows)
    tile_r = int(max(sub_rows, min(512, (tile_r // sub_rows) * sub_rows)))
    tile_r = min(tile_r, _round_up(pl.cdiv(rows_per_anchor, 128), sub_rows))
    tile_m = tile_r * 128

    blocks_per_anchor = pl.cdiv(rows_per_anchor, tile_m)
    total_blocks = A * blocks_per_anchor
    num_chunks = max(1, min(int(num_chunks), total_blocks))
    blocks_per_chunk = pl.cdiv(total_blocks, num_chunks)
    total_blocks_pad = num_chunks * blocks_per_chunk

    rpa_pad = blocks_per_anchor * tile_m
    m_pad = total_blocks_pad * tile_m

    # (N, A, S, S, f) -> (A, rows, f), pad rows per anchor (and extra blocks),
    # then lay rows out lane-dense: (f, rows/128, 128).  Padded target rows get
    # objectness = -1 ("ignore") so they contribute to nothing.
    # TODO(synk): this relayout still makes one extra HBM copy of pred/target
    # (halved by bf16 streaming); emitting the detector head / target pipeline
    # directly in feature-major (A, F, rows) layout would remove it entirely.
    def to_lane_dense(x, feat, pad_val, dtype):
        x = x.astype(dtype)
        x = jnp.moveaxis(x, 1, 0).reshape(A, rows_per_anchor, feat)
        x = jnp.pad(x, ((0, 0), (0, rpa_pad - rows_per_anchor), (0, 0)),
                    constant_values=pad_val)
        x = x.reshape(A * rpa_pad, feat)
        if m_pad > A * rpa_pad:
            x = jnp.pad(x, ((0, m_pad - A * rpa_pad), (0, 0)),
                        constant_values=pad_val)
        return x.T.reshape(feat, m_pad // 128, 128)

    pred_t = to_lane_dense(pred, F, 0, pred_dtype)
    tgt_t = to_lane_dense(target, 6, -1, tgt_dtype)

    # Per-block anchor scalars via SMEM scalar prefetch (reciprocals turn
    # divides into multiplies).
    anc = anchor.astype(jnp.float32).reshape(A, 2)
    blk_aid = jnp.minimum(jnp.arange(total_blocks_pad) // blocks_per_anchor, A - 1)
    aw_pb = anc[blk_aid, 0]
    ah_pb = anc[blk_aid, 1]
    iaw_pb = 1.0 / aw_pb
    iah_pb = 1.0 / ah_pb

    in_map = lambda cp, bj, *pf: (0, cp * blocks_per_chunk + bj, 0)
    out_map = lambda cp, bj, *pf: (cp, 0, 0, 0)

    def in_spec(feat):
        if bufs != 2:
            return pl.BlockSpec((feat, tile_r, 128), in_map,
                                pipeline_mode=pl.Buffered(bufs))
        return pl.BlockSpec((feat, tile_r, 128), in_map)

    kernel = functools.partial(_yolo_loss_kernel, num_classes=C,
                               blocks_per_chunk=blocks_per_chunk,
                               tile_r=tile_r, sub_rows=sub_rows)

    res = pl.pallas_call(
        kernel,
        out_shape=jax.ShapeDtypeStruct((num_chunks, 4, sub_rows, 128), jnp.float32),
        grid_spec=pltpu.PrefetchScalarGridSpec(
            num_scalar_prefetch=4,
            grid=(num_chunks, blocks_per_chunk),
            in_specs=[in_spec(F), in_spec(6)],
            out_specs=pl.BlockSpec((1, 4, sub_rows, 128), out_map),
            scratch_shapes=[pltpu.VMEM((sub_rows, 128), jnp.float32)] * 4,
        ),
        compiler_params=pltpu.CompilerParams(
            dimension_semantics=("parallel", "arbitrary"),
            vmem_limit_bytes=int(vmem_limit)),
    )(aw_pb, ah_pb, iaw_pb, iah_pb, pred_t, tgt_t)

    sums = jnp.sum(res, axis=(0, 2, 3))                 # (4,): one tiny reduce
    noobj_sum, boxobj_sum, ce_sum, n_obj = sums[0], sums[1], sums[2], sums[3]
    class_loss = ce_sum / jnp.maximum(n_obj, 1.0)        # CrossEntropyLoss mean
    full = boxobj_sum + LAMBDA_NOOBJ * noobj_sum + LAMBDA_CLASS * class_loss
    # torch branch: if there is no object at all, only the no-object term remains.
    return jnp.where(n_obj == 0.0, LAMBDA_NOOBJ * noobj_sum, full)


def _yolov3_loss_ref(pred, target, anchor):
    """Pure-JAX reference mirroring the PyTorch forward (self-check only)."""
    t0 = target[..., 0]
    obj = t0 == 1.0
    noobj = t0 == 0.0
    p0 = pred[..., 0]
    bce = jnp.maximum(p0, 0.0) - p0 * t0 + jnp.log1p(jnp.exp(-jnp.abs(p0)))
    no_object_loss = jnp.sum(jnp.where(noobj, bce, 0.0))

    anc = anchor.reshape(1, 3, 1, 1, 2)
    aw, ah = anc[..., 0], anc[..., 1]
    sx = jax.nn.sigmoid(pred[..., 1]); sy = jax.nn.sigmoid(pred[..., 2])
    pw = jnp.exp(pred[..., 3]) * aw;   ph = jnp.exp(pred[..., 4]) * ah
    tx, ty, tw, th = (target[..., k] for k in (1, 2, 3, 4))
    b1x1, b1x2 = sx - pw / 2, sx + pw / 2
    b1y1, b1y2 = sy - ph / 2, sy + ph / 2
    b2x1, b2x2 = tx - tw / 2, tx + tw / 2
    b2y1, b2y2 = ty - th / 2, ty + th / 2
    iw = jnp.maximum(jnp.minimum(b1x2, b2x2) - jnp.maximum(b1x1, b2x1), 0.0)
    ih = jnp.maximum(jnp.minimum(b1y2, b2y2) - jnp.maximum(b1y1, b2y1), 0.0)
    inter = iw * ih
    ious = inter / (jnp.abs((b1x2 - b1x1) * (b1y2 - b1y1)) +
                    jnp.abs((b2x2 - b2x1) * (b2y2 - b2y1)) - inter + 1e-6)
    object_loss = jnp.sum(jnp.where(obj, (jax.nn.sigmoid(p0) - ious * t0) ** 2, 0.0))

    lw = jnp.log(1e-6 + tw / aw); lh = jnp.log(1e-6 + th / ah)
    box_sq = ((sx - tx) ** 2 + (sy - ty) ** 2 +
              (pred[..., 3] - lw) ** 2 + (pred[..., 4] - lh) ** 2)
    box_loss = jnp.sum(jnp.where(obj, box_sq, 0.0))

    logits = pred[..., 5:]
    lse = jax.scipy.special.logsumexp(logits, axis=-1)
    lbl = target[..., 5].astype(jnp.int32)
    picked = jnp.take_along_axis(logits, lbl[..., None], axis=-1)[..., 0]
    n_obj = jnp.sum(obj.astype(jnp.float32))
    class_loss = jnp.sum(jnp.where(obj, lse - picked, 0.0)) / jnp.maximum(n_obj, 1.0)

    full = (LAMBDA_COORD * box_loss + LAMBDA_OBJ * object_loss +
            LAMBDA_NOOBJ * no_object_loss + LAMBDA_CLASS * class_loss)
    return jnp.where(n_obj == 0.0, LAMBDA_NOOBJ * no_object_loss, full)


if __name__ == "__main__":
    key = jax.random.PRNGKey(0)
    N, A, S, C = 2, 3, 8, 4          # rows = 2*3*8*8 = 384, feat = 5 + C = 9
    F = 5 + C
    k1, k2, k3, k4, k5 = jax.random.split(key, 5)

    pred = jax.random.normal(k1, (N, A, S, S, F), jnp.float32)

    # target[..., 0] in {1 (obj), 0 (noobj), -1 (ignore)}
    u = jax.random.uniform(k2, (N, A, S, S))
    obj_flag = jnp.where(u < 0.15, 1.0, jnp.where(u < 0.9, 0.0, -1.0))
    xy = jax.random.uniform(k3, (N, A, S, S, 2), minval=0.0, maxval=1.0)
    wh = jax.random.uniform(k4, (N, A, S, S, 2), minval=0.1, maxval=3.0)
    cls = jax.random.randint(k5, (N, A, S, S, 1), 0, C).astype(jnp.float32)
    target = jnp.concatenate([obj_flag[..., None], xy, wh, cls], axis=-1)

    anchor = jnp.array([[1.0, 2.0], [2.5, 1.5], [3.0, 3.0]], jnp.float32)

    # ---- f32 streaming path vs exact reference.
    loss_f32 = jax.block_until_ready(
        jax.jit(functools.partial(yolov3_loss, io_dtype=jnp.float32))(
            pred, target, anchor))
    ref_f32 = jax.block_until_ready(_yolov3_loss_ref(pred, target, anchor))
    assert jnp.isfinite(loss_f32), f"non-finite loss: {loss_f32}"
    assert jnp.allclose(loss_f32, ref_f32, rtol=2e-3, atol=1e-2), (loss_f32, ref_f32)

    # ---- default bf16 streaming path vs reference on identically-rounded inputs.
    loss_bf16 = jax.block_until_ready(jax.jit(yolov3_loss)(pred, target, anchor))
    ref_bf16 = jax.block_until_ready(_yolov3_loss_ref(
        pred.astype(jnp.bfloat16).astype(jnp.float32),
        target.astype(jnp.bfloat16).astype(jnp.float32), anchor))
    assert jnp.isfinite(loss_bf16), f"non-finite loss: {loss_bf16}"
    assert jnp.allclose(loss_bf16, ref_bf16, rtol=5e-3, atol=5e-2), (loss_bf16, ref_bf16)

    # TODO(synk): the torch module also mutates pred/target in place and
    # detaches ious (backward-only concerns); not replicated in this pure fwd.
    print("KERNEL_OK")
</pallas_src>

<mosaic_0001>
module attributes {stable_mosaic.version = 11 : i64} {
  func.func @_yolo_loss_kernel(%arg0: i32, %arg1: i32, %arg2: memref<3xf32, #tpu.memory_space<smem>>, %arg3: memref<3xf32, #tpu.memory_space<smem>>, %arg4: memref<3xf32, #tpu.memory_space<smem>>, %arg5: memref<3xf32, #tpu.memory_space<smem>>, %arg6: memref<9x8x128xf32, #tpu.memory_space<vmem>>, %arg7: memref<6x8x128xf32, #tpu.memory_space<vmem>>, %arg8: memref<1x4x8x128xf32, #tpu.memory_space<vmem>>, %arg9: memref<8x128xf32, #tpu.memory_space<vmem>>, %arg10: memref<8x128xf32, #tpu.memory_space<vmem>>, %arg11: memref<8x128xf32, #tpu.memory_space<vmem>>, %arg12: memref<8x128xf32, #tpu.memory_space<vmem>>) attributes {dimension_semantics = [#tpu.dimension_semantics<parallel>, #tpu.dimension_semantics<arbitrary>], iteration_bounds = array<i64: 1, 3>, scalar_prefetch = 4 : i64, scratch_operands = 4 : i64, tpu.core_type = #tpu.core_type<tc>, window_params = [{transform_indices = @transform_0, window_bounds = array<i64: 9, 8, 128>}, {transform_indices = @transform_1, window_bounds = array<i64: 6, 8, 128>}, {transform_indices = @transform_2, window_bounds = array<i64: 1, 4, 8, 128>}]} {
    %c0_i32 = arith.constant 0 : i32
    %0 = arith.cmpi eq, %arg1, %c0_i32 : i32
    %1 = arith.extui %0 : i1 to i32
    %c0_i32_0 = arith.constant 0 : i32
    %2 = arith.cmpi ne, %1, %c0_i32_0 : i32
    scf.if %2 {
      %cst_80 = arith.constant 0.000000e+00 : f32
      %243 = vector.broadcast %cst_80 : f32 to vector<8x128xf32>
      %c0_81 = arith.constant 0 : index
      %c0_82 = arith.constant 0 : index
      %244 = vector.load %arg9[%c0_81, %c0_82] : memref<8x128xf32, #tpu.memory_space<vmem>>, vector<8x128xf32>
      tpu.vector_store %arg9[%c0_81, %c0_82], %243 {strides = array<i32>} : memref<8x128xf32, #tpu.memory_space<vmem>>, vector<8x128xf32>,
      %cst_83 = arith.constant 0.000000e+00 : f32
      %245 = vector.broadcast %cst_83 : f32 to vector<8x128xf32>
      %c0_84 = arith.constant 0 : index
      %c0_85 = arith.constant 0 : index
      %246 = vector.load %arg10[%c0_84, %c0_85] : memref<8x128xf32, #tpu.memory_space<vmem>>, vector<8x128xf32>
      tpu.vector_store %arg10[%c0_84, %c0_85], %245 {strides = array<i32>} : memref<8x128xf32, #tpu.memory_space<vmem>>, vector<8x128xf32>,
      %cst_86 = arith.constant 0.000000e+00 : f32
      %247 = vector.broadcast %cst_86 : f32 to vector<8x128xf32>
      %c0_87 = arith.constant 0 : index
      %c0_88 = arith.constant 0 : index
      %248 = vector.load %arg11[%c0_87, %c0_88] : memref<8x128xf32, #tpu.memory_space<vmem>>, vector<8x128xf32>
      tpu.vector_store %arg11[%c0_87, %c0_88], %247 {strides = array<i32>} : memref<8x128xf32, #tpu.memory_space<vmem>>, vector<8x128xf32>,
      %cst_89 = arith.constant 0.000000e+00 : f32
      %249 = vector.broadcast %cst_89 : f32 to vector<8x128xf32>
      %c0_90 = arith.constant 0 : index
      %c0_91 = arith.constant 0 : index
      %250 = vector.load %arg12[%c0_90, %c0_91] : memref<8x128xf32, #tpu.memory_space<vmem>>, vector<8x128xf32>
      tpu.vector_store %arg12[%c0_90, %c0_91], %249 {strides = array<i32>} : memref<8x128xf32, #tpu.memory_space<vmem>>, vector<8x128xf32>,
    } else {
    }
    %c3_i32 = arith.constant 3 : i32
    %3 = arith.muli %arg0, %c3_i32 : i32
    %4 = arith.addi %3, %arg1 : i32
    %5 = arith.index_cast %4 : i32 to index
    %6 = memref.load %arg2[%5] : memref<3xf32, #tpu.memory_space<smem>>
    %7 = arith.index_cast %4 : i32 to index
    %8 = memref.load %arg3[%7] : memref<3xf32, #tpu.memory_space<smem>>
    %9 = arith.index_cast %4 : i32 to index
    %10 = memref.load %arg4[%9] : memref<3xf32, #tpu.memory_space<smem>>
    %11 = arith.index_cast %4 : i32 to index
    %12 = memref.load %arg5[%11] : memref<3xf32, #tpu.memory_space<smem>>
    %c0_i32_1 = arith.constant 0 : i32
    %c1_i32 = arith.constant 1 : i32
    %13 = arith.muli %c0_i32_1, %c1_i32 : i32
    %c0_i32_2 = arith.constant 0 : i32
    %14 = arith.addi %c0_i32_2, %13 : i32
    %c8_i32 = arith.constant 8 : i32
    %15 = arith.muli %14, %c8_i32 : i32
    %16 = tpu.assume_multiple %15, 8 : i32
    %c0 = arith.constant 0 : index
    %17 = arith.index_cast %16 : i32 to index
    %c0_3 = arith.constant 0 : index
    %18 = vector.load %arg7[%c0, %17, %c0_3] : memref<6x8x128xf32, #tpu.memory_space<vmem>>, vector<1x8x128xf32>
    %19 = vector.shape_cast %18 : vector<1x8x128xf32> to vector<8x128xf32>
    %cst = arith.constant 1.000000e+00 : f32
    %20 = vector.broadcast %cst : f32 to vector<8x128xf32>
    %21 = arith.cmpf oeq, %19, %20 : vector<8x128xf32>
    %cst_4 = arith.constant 0.000000e+00 : f32
    %22 = vector.broadcast %cst_4 : f32 to vector<8x128xf32>
    %23 = arith.cmpf oeq, %19, %22 : vector<8x128xf32>
    %cst_5 = arith.constant 0.000000e+00 : f32
    %24 = vector.broadcast %cst_5 : f32 to vector<8x128xf32>
    %c0_6 = arith.constant 0 : index
    %25 = arith.index_cast %16 : i32 to index
    %c0_7 = arith.constant 0 : index
    %26 = vector.load %arg6[%c0_6, %25, %c0_7] : memref<9x8x128xf32, #tpu.memory_space<vmem>>, vector<1x8x128xf32>
    %27 = vector.shape_cast %26 : vector<1x8x128xf32> to vector<8x128xf32>
    %28 = math.absf %27 : vector<8x128xf32>
    %cst_8 = arith.constant 0.000000e+00 : f32
    %29 = vector.broadcast %cst_8 : f32 to vector<8x128xf32>
    %30 = arith.subf %29, %28 : vector<8x128xf32>
    %31 = math.exp %30 : vector<8x128xf32>
    %cst_9 = arith.constant 1.000000e+00 : f32
    %32 = vector.broadcast %cst_9 : f32 to vector<8x128xf32>
    %33 = arith.addf %32, %31 : vector<8x128xf32>
    %34 = tpu.reciprocal %33 {approx = true} : vector<8x128xf32> -> vector<8x128xf32>
    %cst_10 = arith.constant 0.000000e+00 : f32
    %35 = vector.broadcast %cst_10 : f32 to vector<8x128xf32>
    %36 = arith.cmpf oge, %27, %35 : vector<8x128xf32>
    %37 = arith.mulf %31, %34 : vector<8x128xf32>
    %38 = arith.select %36, %34, %37 : vector<8x128xi1>, vector<8x128xf32>
    %cst_11 = arith.constant 0.000000e+00 : f32
    %39 = vector.broadcast %cst_11 : f32 to vector<8x128xf32>
    %40 = arith.maximumf %27, %39 : vector<8x128xf32>
    %41 = arith.mulf %27, %19 : vector<8x128xf32>
    %42 = arith.subf %40, %41 : vector<8x128xf32>
    %43 = math.log1p %31 : vector<8x128xf32>
    %44 = arith.addf %42, %43 : vector<8x128xf32>
    %c0_12 = arith.constant 0 : index
    %c0_13 = arith.constant 0 : index
    %45 = vector.load %arg9[%c0_12, %c0_13] : memref<8x128xf32, #tpu.memory_space<vmem>>, vector<8x128xf32>
    %46 = arith.select %23, %44, %24 : vector<8x128xi1>, vector<8x128xf32>
    %47 = arith.addf %45, %46 : vector<8x128xf32>
    %c0_14 = arith.constant 0 : index
    %c0_15 = arith.constant 0 : index
    %48 = vector.load %arg9[%c0_14, %c0_15] : memref<8x128xf32, #tpu.memory_space<vmem>>, vector<8x128xf32>
    tpu.vector_store %arg9[%c0_14, %c0_15], %47 {strides = array<i32>} : memref<8x128xf32, #tpu.memory_space<vmem>>, vector<8x128xf32>,
    %c1 = arith.constant 1 : index
    %49 = arith.index_cast %16 : i32 to index
    %c0_16 = arith.constant 0 : index
    %50 = vector.load %arg6[%c1, %49, %c0_16] : memref<9x8x128xf32, #tpu.memory_space<vmem>>, vector<1x8x128xf32>
    %51 = vector.shape_cast %50 : vector<1x8x128xf32> to vector<8x128xf32>
    %52 = arith.negf %51 : vector<8x128xf32>
    %53 = math.exp %52 : vector<8x128xf32>
    %cst_17 = arith.constant 1.000000e+00 : f32
    %54 = vector.broadcast %cst_17 : f32 to vector<8x128xf32>
    %55 = arith.addf %54, %53 : vector<8x128xf32>
    %56 = arith.divf %54, %55 : vector<8x128xf32>
    %c2 = arith.constant 2 : index
    %57 = arith.index_cast %16 : i32 to index
    %c0_18 = arith.constant 0 : index
    %58 = vector.load %arg6[%c2, %57, %c0_18] : memref<9x8x128xf32, #tpu.memory_space<vmem>>, vector<1x8x128xf32>
    %59 = vector.shape_cast %58 : vector<1x8x128xf32> to vector<8x128xf32>
    %60 = arith.negf %59 : vector<8x128xf32>
    %61 = math.exp %60 : vector<8x128xf32>
    %cst_19 = arith.constant 1.000000e+00 : f32
    %62 = vector.broadcast %cst_19 : f32 to vector<8x128xf32>
    %63 = arith.addf %62, %61 : vector<8x128xf32>
    %64 = arith.divf %62, %63 : vector<8x128xf32>
    %c3 = arith.constant 3 : index
    %65 = arith.index_cast %16 : i32 to index
    %c0_20 = arith.constant 0 : index
    %66 = vector.load %arg6[%c3, %65, %c0_20] : memref<9x8x128xf32, #tpu.memory_space<vmem>>, vector<1x8x128xf32>
    %67 = vector.shape_cast %66 : vector<1x8x128xf32> to vector<8x128xf32>
    %c4 = arith.constant 4 : index
    %68 = arith.index_cast %16 : i32 to index
    %c0_21 = arith.constant 0 : index
    %69 = vector.load %arg6[%c4, %68, %c0_21] : memref<9x8x128xf32, #tpu.memory_space<vmem>>, vector<1x8x128xf32>
    %70 = vector.shape_cast %69 : vector<1x8x128xf32> to vector<8x128xf32>
    %71 = math.exp %67 : vector<8x128xf32>
    %72 = vector.broadcast %6 : f32 to vector<8x128xf32>
    %73 = arith.mulf %71, %72 : vector<8x128xf32>
    %74 = math.exp %70 : vector<8x128xf32>
    %75 = vector.broadcast %8 : f32 to vector<8x128xf32>
    %76 = arith.mulf %74, %75 : vector<8x128xf32>
    %c1_22 = arith.constant 1 : index
    %77 = arith.index_cast %16 : i32 to index
    %c0_23 = arith.constant 0 : index
    %78 = vector.load %arg7[%c1_22, %77, %c0_23] : memref<6x8x128xf32, #tpu.memory_space<vmem>>, vector<1x8x128xf32>
    %79 = vector.shape_cast %78 : vector<1x8x128xf32> to vector<8x128xf32>
    %c2_24 = arith.constant 2 : index
    %80 = arith.index_cast %16 : i32 to index
    %c0_25 = arith.constant 0 : index
    %81 = vector.load %arg7[%c2_24, %80, %c0_25] : memref<6x8x128xf32, #tpu.memory_space<vmem>>, vector<1x8x128xf32>
    %82 = vector.shape_cast %81 : vector<1x8x128xf32> to vector<8x128xf32>
    %c3_26 = arith.constant 3 : index
    %83 = arith.index_cast %16 : i32 to index
    %c0_27 = arith.constant 0 : index
    %84 = vector.load %arg7[%c3_26, %83, %c0_27] : memref<6x8x128xf32, #tpu.memory_space<vmem>>, vector<1x8x128xf32>
    %85 = vector.shape_cast %84 : vector<1x8x128xf32> to vector<8x128xf32>
    %c4_28 = arith.constant 4 : index
    %86 = arith.index_cast %16 : i32 to index
    %c0_29 = arith.constant 0 : index
    %87 = vector.load %arg7[%c4_28, %86, %c0_29] : memref<6x8x128xf32, #tpu.memory_space<vmem>>, vector<1x8x128xf32>
    %88 = vector.shape_cast %87 : vector<1x8x128xf32> to vector<8x128xf32>
    %cst_30 = arith.constant 5.000000e-01 : f32
    %89 = vector.broadcast %cst_30 : f32 to vector<8x128xf32>
    %90 = arith.mulf %73, %89 : vector<8x128xf32>
    %91 = arith.subf %56, %90 : vector<8x128xf32>
    %cst_31 = arith.constant 5.000000e-01 : f32
    %92 = vector.broadcast %cst_31 : f32 to vector<8x128xf32>
    %93 = arith.mulf %73, %92 : vector<8x128xf32>
    %94 = arith.addf %56, %93 : vector<8x128xf32>
    %cst_32 = arith.constant 5.000000e-01 : f32
    %95 = vector.broadcast %cst_32 : f32 to vector<8x128xf32>
    %96 = arith.mulf %76, %95 : vector<8x128xf32>
    %97 = arith.subf %64, %96 : vector<8x128xf32>
    %cst_33 = arith.constant 5.000000e-01 : f32
    %98 = vector.broadcast %cst_33 : f32 to vector<8x128xf32>
    %99 = arith.mulf %76, %98 : vector<8x128xf32>
    %100 = arith.addf %64, %99 : vector<8x128xf32>
    %cst_34 = arith.constant 5.000000e-01 : f32
    %101 = vector.broadcast %cst_34 : f32 to vector<8x128xf32>
    %102 = arith.mulf %85, %101 : vector<8x128xf32>
    %103 = arith.subf %79, %102 : vector<8x128xf32>
    %cst_35 = arith.constant 5.000000e-01 : f32
    %104 = vector.broadcast %cst_35 : f32 to vector<8x128xf32>
    %105 = arith.mulf %85, %104 : vector<8x128xf32>
    %106 = arith.addf %79, %105 : vector<8x128xf32>
    %cst_36 = arith.constant 5.000000e-01 : f32
    %107 = vector.broadcast %cst_36 : f32 to vector<8x128xf32>
    %108 = arith.mulf %88, %107 : vector<8x128xf32>
    %109 = arith.subf %82, %108 : vector<8x128xf32>
    %cst_37 = arith.constant 5.000000e-01 : f32
    %110 = vector.broadcast %cst_37 : f32 to vector<8x128xf32>
    %111 = arith.mulf %88, %110 : vector<8x128xf32>
    %112 = arith.addf %82, %111 : vector<8x128xf32>
    %113 = arith.minimumf %94, %106 : vector<8x128xf32>
    %114 = arith.maximumf %91, %103 : vector<8x128xf32>
    %115 = arith.subf %113, %114 : vector<8x128xf32>
    %cst_38 = arith.constant 0.000000e+00 : f32
    %116 = vector.broadcast %cst_38 : f32 to vector<8x128xf32>
    %117 = arith.maximumf %115, %116 : vector<8x128xf32>
    %118 = arith.minimumf %100, %112 : vector<8x128xf32>
    %119 = arith.maximumf %97, %109 : vector<8x128xf32>
    %120 = arith.subf %118, %119 : vector<8x128xf32>
    %cst_39 = arith.constant 0.000000e+00 : f32
    %121 = vector.broadcast %cst_39 : f32 to vector<8x128xf32>
    %122 = arith.maximumf %120, %121 : vector<8x128xf32>
    %123 = arith.mulf %117, %122 : vector<8x128xf32>
    %124 = arith.subf %94, %91 : vector<8x128xf32>
    %125 = arith.subf %100, %97 : vector<8x128xf32>
    %126 = arith.mulf %124, %125 : vector<8x128xf32>
    %127 = math.absf %126 : vector<8x128xf32>
    %128 = arith.subf %106, %103 : vector<8x128xf32>
    %129 = arith.subf %112, %109 : vector<8x128xf32>
    %130 = arith.mulf %128, %129 : vector<8x128xf32>
    %131 = math.absf %130 : vector<8x128xf32>
    %132 = arith.addf %127, %131 : vector<8x128xf32>
    %133 = arith.subf %132, %123 : vector<8x128xf32>
    %cst_40 = arith.constant 9.99999997E-7 : f32
    %134 = vector.broadcast %cst_40 : f32 to vector<8x128xf32>
    %135 = arith.addf %133, %134 : vector<8x128xf32>
    %136 = tpu.reciprocal %135 {approx = true} : vector<8x128xf32> -> vector<8x128xf32>
    %137 = arith.mulf %123, %136 : vector<8x128xf32>
    %138 = arith.mulf %137, %19 : vector<8x128xf32>
    %139 = arith.subf %38, %138 : vector<8x128xf32>
    %140 = arith.mulf %139, %139 : vector<8x128xf32>
    %141 = vector.broadcast %10 : f32 to vector<8x128xf32>
    %142 = arith.mulf %85, %141 : vector<8x128xf32>
    %cst_41 = arith.constant 9.99999997E-7 : f32
    %143 = vector.broadcast %cst_41 : f32 to vector<8x128xf32>
    %144 = arith.addf %143, %142 : vector<8x128xf32>
    %145 = math.log %144 : vector<8x128xf32>
    %146 = vector.broadcast %12 : f32 to vector<8x128xf32>
    %147 = arith.mulf %88, %146 : vector<8x128xf32>
    %cst_42 = arith.constant 9.99999997E-7 : f32
    %148 = vector.broadcast %cst_42 : f32 to vector<8x128xf32>
    %149 = arith.addf %148, %147 : vector<8x128xf32>
    %150 = math.log %149 : vector<8x128xf32>
    %151 = arith.subf %56, %79 : vector<8x128xf32>
    %152 = arith.mulf %151, %151 : vector<8x128xf32>
    %153 = arith.subf %64, %82 : vector<8x128xf32>
    %154 = arith.mulf %153, %153 : vector<8x128xf32>
    %155 = arith.addf %152, %154 : vector<8x128xf32>
    %156 = arith.subf %67, %145 : vector<8x128xf32>
    %157 = arith.mulf %156, %156 : vector<8x128xf32>
    %158 = arith.addf %155, %157 : vector<8x128xf32>
    %159 = arith.subf %70, %150 : vector<8x128xf32>
    %160 = arith.mulf %159, %159 : vector<8x128xf32>
    %161 = arith.addf %158, %160 : vector<8x128xf32>
    %c0_43 = arith.constant 0 : index
    %c0_44 = arith.constant 0 : index
    %162 = vector.load %arg10[%c0_43, %c0_44] : memref<8x128xf32, #tpu.memory_space<vmem>>, vector<8x128xf32>
    %cst_45 = arith.constant 1.000000e+01 : f32
    %163 = vector.broadcast %cst_45 : f32 to vector<8x128xf32>
    %164 = arith.mulf %163, %161 : vector<8x128xf32>
    %cst_46 = arith.constant 1.000000e+00 : f32
    %165 = vector.broadcast %cst_46 : f32 to vector<8x128xf32>
    %166 = arith.mulf %165, %140 : vector<8x128xf32>
    %167 = arith.addf %164, %166 : vector<8x128xf32>
    %168 = arith.select %21, %167, %24 : vector<8x128xi1>, vector<8x128xf32>
    %169 = arith.addf %162, %168 : vector<8x128xf32>
    %c0_47 = arith.constant 0 : index
    %c0_48 = arith.constant 0 : index
    %170 = vector.load %arg10[%c0_47, %c0_48] : memref<8x128xf32, #tpu.memory_space<vmem>>, vector<8x128xf32>
    tpu.vector_store %arg10[%c0_47, %c0_48], %169 {strides = array<i32>} : memref<8x128xf32, #tpu.memory_space<vmem>>, vector<8x128xf32>,
    %c5 = arith.constant 5 : index
    %171 = arith.index_cast %16 : i32 to index
    %c0_49 = arith.constant 0 : index
    %172 = vector.load %arg7[%c5, %171, %c0_49] : memref<6x8x128xf32, #tpu.memory_space<vmem>>, vector<1x8x128xf32>
    %173 = vector.shape_cast %172 : vector<1x8x128xf32> to vector<8x128xf32>
    %174 = arith.fptosi %173 : vector<8x128xf32> to vector<8x128xi32>
    %c5_50 = arith.constant 5 : index
    %175 = arith.index_cast %16 : i32 to index
    %c0_51 = arith.constant 0 : index
    %176 = vector.load %arg6[%c5_50, %175, %c0_51] : memref<9x8x128xf32, #tpu.memory_space<vmem>>, vector<1x8x128xf32>
    %177 = vector.shape_cast %176 : vector<1x8x128xf32> to vector<8x128xf32>
    %c6 = arith.constant 6 : index
    %178 = arith.index_cast %16 : i32 to index
    %c0_52 = arith.constant 0 : index
    %179 = vector.load %arg6[%c6, %178, %c0_52] : memref<9x8x128xf32, #tpu.memory_space<vmem>>, vector<1x8x128xf32>
    %180 = vector.shape_cast %179 : vector<1x8x128xf32> to vector<8x128xf32>
    %181 = arith.maximumf %177, %180 : vector<8x128xf32>
    %c7 = arith.constant 7 : index
    %182 = arith.index_cast %16 : i32 to index
    %c0_53 = arith.constant 0 : index
    %183 = vector.load %arg6[%c7, %182, %c0_53] : memref<9x8x128xf32, #tpu.memory_space<vmem>>, vector<1x8x128xf32>
    %184 = vector.shape_cast %183 : vector<1x8x128xf32> to vector<8x128xf32>
    %185 = arith.maximumf %181, %184 : vector<8x128xf32>
    %c8 = arith.constant 8 : index
    %186 = arith.index_cast %16 : i32 to index
    %c0_54 = arith.constant 0 : index
    %187 = vector.load %arg6[%c8, %186, %c0_54] : memref<9x8x128xf32, #tpu.memory_space<vmem>>, vector<1x8x128xf32>
    %188 = vector.shape_cast %187 : vector<1x8x128xf32> to vector<8x128xf32>
    %189 = arith.maximumf %185, %188 : vector<8x128xf32>
    %cst_55 = arith.constant 0.000000e+00 : f32
    %190 = vector.broadcast %cst_55 : f32 to vector<8x128xf32>
    %cst_56 = arith.constant 0.000000e+00 : f32
    %191 = vector.broadcast %cst_56 : f32 to vector<8x128xf32>
    %c5_57 = arith.constant 5 : index
    %192 = arith.index_cast %16 : i32 to index
    %c0_58 = arith.constant 0 : index
    %193 = vector.load %arg6[%c5_57, %192, %c0_58] : memref<9x8x128xf32, #tpu.memory_space<vmem>>, vector<1x8x128xf32>
    %194 = vector.shape_cast %193 : vector<1x8x128xf32> to vector<8x128xf32>
    %195 = arith.subf %194, %189 : vector<8x128xf32>
    %196 = math.exp %195 : vector<8x128xf32>
    %197 = arith.addf %190, %196 : vector<8x128xf32>
    %c0_i32_59 = arith.constant 0 : i32
    %198 = vector.broadcast %c0_i32_59 : i32 to vector<8x128xi32>
    %199 = arith.cmpi eq, %174, %198 : vector<8x128xi32>
    %200 = arith.select %199, %194, %191 : vector<8x128xi1>, vector<8x128xf32>
    %c6_60 = arith.constant 6 : index
    %201 = arith.index_cast %16 : i32 to index
    %c0_61 = arith.constant 0 : index
    %202 = vector.load %arg6[%c6_60, %201, %c0_61] : memref<9x8x128xf32, #tpu.memory_space<vmem>>, vector<1x8x128xf32>
    %203 = vector.shape_cast %202 : vector<1x8x128xf32> to vector<8x128xf32>
    %204 = arith.subf %203, %189 : vector<8x128xf32>
    %205 = math.exp %204 : vector<8x128xf32>
    %206 = arith.addf %197, %205 : vector<8x128xf32>
    %c1_i32_62 = arith.constant 1 : i32
    %207 = vector.broadcast %c1_i32_62 : i32 to vector<8x128xi32>
    %208 = arith.cmpi eq, %174, %207 : vector<8x128xi32>
    %209 = arith.select %208, %203, %200 : vector<8x128xi1>, vector<8x128xf32>
    %c7_63 = arith.constant 7 : index
    %210 = arith.index_cast %16 : i32 to index
    %c0_64 = arith.constant 0 : index
    %211 = vector.load %arg6[%c7_63, %210, %c0_64] : memref<9x8x128xf32, #tpu.memory_space<vmem>>, vector<1x8x128xf32>
    %212 = vector.shape_cast %211 : vector<1x8x128xf32> to vector<8x128xf32>
    %213 = arith.subf %212, %189 : vector<8x128xf32>
    %214 = math.exp %213 : vector<8x128xf32>
    %215 = arith.addf %206, %214 : vector<8x128xf32>
    %c2_i32 = arith.constant 2 : i32
    %216 = vector.broadcast %c2_i32 : i32 to vector<8x128xi32>
    %217 = arith.cmpi eq, %174, %216 : vector<8x128xi32>
    %218 = arith.select %217, %212, %209 : vector<8x128xi1>, vector<8x128xf32>
    %c8_65 = arith.constant 8 : index
    %219 = arith.index_cast %16 : i32 to index
    %c0_66 = arith.constant 0 : index
    %220 = vector.load %arg6[%c8_65, %219, %c0_66] : memref<9x8x128xf32, #tpu.memory_space<vmem>>, vector<1x8x128xf32>
    %221 = vector.shape_cast %220 : vector<1x8x128xf32> to vector<8x128xf32>
    %222 = arith.subf %221, %189 : vector<8x128xf32>
    %223 = math.exp %222 : vector<8x128xf32>
    %224 = arith.addf %215, %223 : vector<8x128xf32>
    %c3_i32_67 = arith.constant 3 : i32
    %225 = vector.broadcast %c3_i32_67 : i32 to vector<8x128xi32>
    %226 = arith.cmpi eq, %174, %225 : vector<8x128xi32>
    %227 = arith.select %226, %221, %218 : vector<8x128xi1>, vector<8x128xf32>
    %228 = math.log %224 : vector<8x128xf32>
    %229 = arith.addf %189, %228 : vector<8x128xf32>
    %230 = arith.subf %229, %227 : vector<8x128xf32>
    %c0_68 = arith.constant 0 : index
    %c0_69 = arith.constant 0 : index
    %231 = vector.load %arg11[%c0_68, %c0_69] : memref<8x128xf32, #tpu.memory_space<vmem>>, vector<8x128xf32>
    %232 = arith.select %21, %230, %24 : vector<8x128xi1>, vector<8x128xf32>
    %233 = arith.addf %231, %232 : vector<8x128xf32>
    %c0_70 = arith.constant 0 : index
    %c0_71 = arith.constant 0 : index
    %234 = vector.load %arg11[%c0_70, %c0_71] : memref<8x128xf32, #tpu.memory_space<vmem>>, vector<8x128xf32>
    tpu.vector_store %arg11[%c0_70, %c0_71], %233 {strides = array<i32>} : memref<8x128xf32, #tpu.memory_space<vmem>>, vector<8x128xf32>,
    %c0_72 = arith.constant 0 : index
    %c0_73 = arith.constant 0 : index
    %235 = vector.load %arg12[%c0_72, %c0_73] : memref<8x128xf32, #tpu.memory_space<vmem>>, vector<8x128xf32>
    %cst_74 = arith.constant 1.000000e+00 : f32
    %236 = vector.broadcast %cst_74 : f32 to vector<8x128xf32>
    %237 = arith.select %21, %236, %24 : vector<8x128xi1>, vector<8x128xf32>
    %238 = arith.addf %235, %237 : vector<8x128xf32>
    %c0_75 = arith.constant 0 : index
    %c0_76 = arith.constant 0 : index
    %239 = vector.load %arg12[%c0_75, %c0_76] : memref<8x128xf32, #tpu.memory_space<vmem>>, vector<8x128xf32>
    tpu.vector_store %arg12[%c0_75, %c0_76], %238 {strides = array<i32>} : memref<8x128xf32, #tpu.memory_space<vmem>>, vector<8x128xf32>,
    %c1_i32_77 = arith.constant 1 : i32
    %c2_i32_78 = arith.constant 2 : i32
    %240 = arith.cmpi eq, %arg1, %c2_i32_78 : i32
    %241 = arith.extui %240 : i1 to i32
    %c0_i32_79 = arith.constant 0 : i32
    %242 = arith.cmpi ne, %241, %c0_i32_79 : i32
    scf.if %242 {
      %c0_80 = arith.constant 0 : index
      %c0_81 = arith.constant 0 : index
      %243 = vector.load %arg9[%c0_80, %c0_81] : memref<8x128xf32, #tpu.memory_space<vmem>>, vector<8x128xf32>
      %c0_82 = arith.constant 0 : index
      %c0_83 = arith.constant 0 : index
      %c0_84 = arith.constant 0 : index
      %c0_85 = arith.constant 0 : index
      %244 = vector.load %arg8[%c0_82, %c0_83, %c0_84, %c0_85] : memref<1x4x8x128xf32, #tpu.memory_space<vmem>>, vector<1x1x8x128xf32>
      %245 = vector.shape_cast %244 : vector<1x1x8x128xf32> to vector<8x128xf32>
      %246 = vector.shape_cast %243 : vector<8x128xf32> to vector<1x1x8x128xf32>
      tpu.vector_store %arg8[%c0_82, %c0_83, %c0_84, %c0_85], %246 {strides = array<i32>} : memref<1x4x8x128xf32, #tpu.memory_space<vmem>>, vector<1x1x8x128xf32>,
      %c0_86 = arith.constant 0 : index
      %c0_87 = arith.constant 0 : index
      %247 = vector.load %arg10[%c0_86, %c0_87] : memref<8x128xf32, #tpu.memory_space<vmem>>, vector<8x128xf32>
      %c0_88 = arith.constant 0 : index
      %c1_89 = arith.constant 1 : index
      %c0_90 = arith.constant 0 : index
      %c0_91 = arith.constant 0 : index
      %248 = vector.load %arg8[%c0_88, %c1_89, %c0_90, %c0_91] : memref<1x4x8x128xf32, #tpu.memory_space<vmem>>, vector<1x1x8x128xf32>
      %249 = vector.shape_cast %248 : vector<1x1x8x128xf32> to vector<8x128xf32>
      %250 = vector.shape_cast %247 : vector<8x128xf32> to vector<1x1x8x128xf32>
      tpu.vector_store %arg8[%c0_88, %c1_89, %c0_90, %c0_91], %250 {strides = array<i32>} : memref<1x4x8x128xf32, #tpu.memory_space<vmem>>, vector<1x1x8x128xf32>,
      %c0_92 = arith.constant 0 : index
      %c0_93 = arith.constant 0 : index
      %251 = vector.load %arg11[%c0_92, %c0_93] : memref<8x128xf32, #tpu.memory_space<vmem>>, vector<8x128xf32>
      %c0_94 = arith.constant 0 : index
      %c2_95 = arith.constant 2 : index
      %c0_96 = arith.constant 0 : index
      %c0_97 = arith.constant 0 : index
      %252 = vector.load %arg8[%c0_94, %c2_95, %c0_96, %c0_97] : memref<1x4x8x128xf32, #tpu.memory_space<vmem>>, vector<1x1x8x128xf32>
      %253 = vector.shape_cast %252 : vector<1x1x8x128xf32> to vector<8x128xf32>
      %254 = vector.shape_cast %251 : vector<8x128xf32> to vector<1x1x8x128xf32>
      tpu.vector_store %arg8[%c0_94, %c2_95, %c0_96, %c0_97], %254 {strides = array<i32>} : memref<1x4x8x128xf32, #tpu.memory_space<vmem>>, vector<1x1x8x128xf32>,
      %c0_98 = arith.constant 0 : index
      %c0_99 = arith.constant 0 : index
      %255 = vector.load %arg12[%c0_98, %c0_99] : memref<8x128xf32, #tpu.memory_space<vmem>>, vector<8x128xf32>
      %c0_100 = arith.constant 0 : index
      %c3_101 = arith.constant 3 : index
      %c0_102 = arith.constant 0 : index
      %c0_103 = arith.constant 0 : index
      %256 = vector.load %arg8[%c0_100, %c3_101, %c0_102, %c0_103] : memref<1x4x8x128xf32, #tpu.memory_space<vmem>>, vector<1x1x8x128xf32>
      %257 = vector.shape_cast %256 : vector<1x1x8x128xf32> to vector<8x128xf32>
      %258 = vector.shape_cast %255 : vector<8x128xf32> to vector<1x1x8x128xf32>
      tpu.vector_store %arg8[%c0_100, %c3_101, %c0_102, %c0_103], %258 {strides = array<i32>} : memref<1x4x8x128xf32, #tpu.memory_space<vmem>>, vector<1x1x8x128xf32>,
    } else {
    }
    return
  }
  func.func @transform_0(%arg0: i32, %arg1: i32, %arg2: memref<3xf32, #tpu.memory_space<smem>>, %arg3: memref<3xf32, #tpu.memory_space<smem>>, %arg4: memref<3xf32, #tpu.memory_space<smem>>, %arg5: memref<3xf32, #tpu.memory_space<smem>>) -> (i32, i32, i32) {
    %c3_i32 = arith.constant 3 : i32
    %0 = arith.muli %arg0, %c3_i32 : i32
    %1 = arith.addi %0, %arg1 : i32
    %c0_i32 = arith.constant 0 : i32
    %c0_i32_0 = arith.constant 0 : i32
    %c0_i32_1 = arith.constant 0 : i32
    return %c0_i32, %1, %c0_i32_0 : i32, i32, i32
  }
  func.func @transform_1(%arg0: i32, %arg1: i32, %arg2: memref<3xf32, #tpu.memory_space<smem>>, %arg3: memref<3xf32, #tpu.memory_space<smem>>, %arg4: memref<3xf32, #tpu.memory_space<smem>>, %arg5: memref<3xf32, #tpu.memory_space<smem>>) -> (i32, i32, i32) {
    %c3_i32 = arith.constant 3 : i32
    %0 = arith.muli %arg0, %c3_i32 : i32
    %1 = arith.addi %0, %arg1 : i32
    %c0_i32 = arith.constant 0 : i32
    %c0_i32_0 = arith.constant 0 : i32
    %c0_i32_1 = arith.constant 0 : i32
    return %c0_i32, %1, %c0_i32_0 : i32, i32, i32
  }
  func.func @transform_2(%arg0: i32, %arg1: i32, %arg2: memref<3xf32, #tpu.memory_space<smem>>, %arg3: memref<3xf32, #tpu.memory_space<smem>>, %arg4: memref<3xf32, #tpu.memory_space<smem>>, %arg5: memref<3xf32, #tpu.memory_space<smem>>) -> (i32, i32, i32, i32) {
    %c0_i32 = arith.constant 0 : i32
    %c0_i32_0 = arith.constant 0 : i32
    %c0_i32_1 = arith.constant 0 : i32
    %c0_i32_2 = arith.constant 0 : i32
    return %arg0, %c0_i32, %c0_i32_0, %c0_i32_1 : i32, i32, i32, i32
  }
}

</mosaic_0001>

<llo_original>
// kernel: yolov3_loss.1
$region0: #{yolov3_loss.1}
  #allocation0 [shape = 'u32[]', space=smem, size = 0x4, offset = 0x4, fixed_abs, tag = 'smem constant byte address 0x4 - core index']
  #allocation1 [shape = 'u32[72,128]{1,0:T(1,128)}', space=vmem, size = 0x9000, scoped, tag = 'internal scratch']
  #allocation2 [shape = 'f32[8,128]{1,0:T(8,128)}', space=vmem, size = 0x1000, scoped, tag = 'scratch operand']
  #allocation3 [shape = 'f32[8,128]{1,0:T(8,128)}', space=vmem, size = 0x1000, scoped, tag = 'scratch operand']
  #allocation4 [shape = 'f32[8,128]{1,0:T(8,128)}', space=vmem, size = 0x1000, scoped, tag = 'scratch operand']
  #allocation5 [shape = 'f32[8,128]{1,0:T(8,128)}', space=vmem, size = 0x1000, scoped, tag = 'scratch operand']
  #allocation6 [shape = 's32[1]{0}', space=sflag, size = 0x4, scoped, tag = 'scoped memory for yolov3_loss.1']
  #allocation7 [shape = 'u8[512]{0}', space=smem, size = 0x200, scoped, tag = 'prefetched SMEM operand 0']
  #allocation8 [shape = 'u8[512]{0}', space=smem, size = 0x200, scoped, tag = 'prefetched SMEM operand 1']
  #allocation9 [shape = 'u8[512]{0}', space=smem, size = 0x200, scoped, tag = 'prefetched SMEM operand 2']
  #allocation10 [shape = 'u8[512]{0}', space=smem, size = 0x200, scoped, tag = 'prefetched SMEM operand 3']
  %s0 = inlined_call_operand.vmem [shape: f32[3], index: 0, kind: input, shape index: {}]
  %s1 = inlined_call_operand.vmem [shape: f32[3], index: 1, kind: input, shape index: {}]
  %s2 = inlined_call_operand.vmem [shape: f32[3], index: 2, kind: input, shape index: {}]
  %s3 = inlined_call_operand.vmem [shape: f32[3], index: 3, kind: input, shape index: {}]
  %s4 = inlined_call_operand.vmem [shape: f32[9,24,128], index: 4, kind: input, shape index: {}]
  %s5 = inlined_call_operand.vmem [shape: f32[6,24,128], index: 5, kind: input, shape index: {}]
  %s6 = inlined_call_operand.vmem [shape: f32[1,4,8,128], index: 6, kind: output, shape index: {}]
  %s7 = sld [smem:[#allocation0]]
  $region125: #{yolov3_loss.1} parent=0
    _
  %s9 = ssub.s32 1, %s7
  %s10 = scalar_select 0, %s9, %s7
  %s12 = sshll.u32 %s0, 4
  %s13 = int_to_ptr.vmem [resolvable:$true] %s12
  %15 = dma.vmem_to_smem %s13, 16, [#allocation7], [#allocation6]
  %s17 = sshll.u32 %s1, 4
  %s18 = int_to_ptr.vmem [resolvable:$true] %s17
  %20 = dma.vmem_to_smem %s18, 16, [#allocation8], [#allocation6]
  %s22 = sshll.u32 %s2, 4
  %s23 = int_to_ptr.vmem [resolvable:$true] %s22
  %25 = dma.vmem_to_smem %s23, 16, [#allocation9], [#allocation6]
  %s27 = sshll.u32 %s3, 4
  %s28 = int_to_ptr.vmem [resolvable:$true] %s27
  %30 = dma.vmem_to_smem %s28, 16, [#allocation10], [#allocation6]
  %32 = dma.done [#allocation6], 64
  %33 = sfence
  $region1: #{yolov3_loss.1} parent=0
    #allocation11 [shape = 'u8[73728]{0}', space=vmem, size = 0x12000, scoped, tag = 'input window, operand 4']
    #allocation12 [shape = 'u8[49152]{0}', space=vmem, size = 0xc000, scoped, tag = 'input window, operand 5']
    loop: start=0, step=1, limit=5
    $region2: #{yolov3_loss.1} parent=1 // loop_pre_header
      _
    $region3: #{yolov3_loss.1} parent=1 // loop_header
      %s35 = sphi 0, %s39
      %p36 = scmp.ge.s32.totalorder %s35, 5
      %s42 = sphi 0, %s54
      %s43 = sphi 0, %s50
      %s44 = sphi 0, %s42
      %s45 = sphi 0, %s43
      %s46 = sphi 0, %s44
      %s47 = sphi 0, %s45
      %s61 = sphi 0, %s63
      %s64 = sphi 0, %s61
      %s65 = sphi 0, %s64
      %s81 = sphi 0, %s65
      %s91 = sphi 0, %s93
      %s94 = sphi 0, %s91
      %s95 = sphi 0, %s94
      %s111 = sphi 0, %s95
      %s117 = sphi 0, %s119
      %s120 = sphi 0, %s117
      %s121 = sphi 0, %s120
      %s137 = sphi 0, %s121
    $region4: #{yolov3_loss.1} parent=1 // loop_header_branch
      %38 = sbr.rel (%p36) target = $region8
    $region5: #{yolov3_loss.1} parent=1 // loop_body
      %s40 = ssub.s32 %s35, 1
      %s41 = ssub.s32 %s35, 2
      %s48 = sadd.s32 1, %s43
      %p49 = scmp.ge.s32.totalorder %s48, 3
      %s50 = scalar_select %p49, 0, %s48
      %s51 = sadd.s32 1, %s42
      %s52 = scalar_select %p49, %s51, %s42
      %p53 = scmp.ge.s32.totalorder %s52, 1
      %s54 = scalar_select %p53, 0, %s52
      %s55 = smul.u32 %s42, 3
      %s56 = sadd.s32 %s55, %s43
      %s57 = smul.u32 %s54, 3
      %s58 = sadd.s32 %s57, %s50
      %s59 = ssub.s32 %s56, %s58
      %p60 = scmp.eq.s32.totalorder %s59, 0
      %s62 = sadd.s32 %s61, 1
      %s63 = scalar_select %p60, %s61, %s62
      %p66 = pneg %p60
      %p67 = scmp.eq.s32.totalorder %s35, 2
      %p68 = por %p66, %p67
      %p69 = scmp.ne.s32.totalorder %s61, %s64
      %p70 = scmp.eq.s32.totalorder %s35, 0
      %p71 = por %p69, %p70
      %p72 = scmp.ne.s32.totalorder %s61, %s64
      %p73 = scmp.eq.s32.totalorder %s40, 2
      %p74 = por %p72, %p73
      %p75 = scmp.ne.s32.totalorder %s64, %s65
      %p76 = scmp.eq.s32.totalorder %s40, 0
      %p77 = por %p75, %p76
      %p78 = scmp.ne.s32.totalorder %s64, %s65
      %p79 = scmp.eq.s32.totalorder %s41, 2
      %p80 = por %p78, %p79
      %p82 = scmp.ne.s32.totalorder %s65, %s81
      %p83 = scmp.eq.s32.totalorder %s41, 0
      %p84 = por %p82, %p83
      %s85 = smul.u32 %s42, 3
      %s86 = sadd.s32 %s85, %s43
      %s87 = smul.u32 %s54, 3
      %s88 = sadd.s32 %s87, %s50
      %s89 = ssub.s32 %s86, %s88
      %p90 = scmp.eq.s32.totalorder %s89, 0
      %s92 = sadd.s32 %s91, 1
      %s93 = scalar_select %p90, %s91, %s92
      %p96 = pneg %p90
      %p97 = scmp.eq.s32.totalorder %s35, 2
      %p98 = por %p96, %p97
      %p99 = scmp.ne.s32.totalorder %s91, %s94
      %p100 = scmp.eq.s32.totalorder %s35, 0
      %p101 = por %p99, %p100
      %p102 = scmp.ne.s32.totalorder %s91, %s94
      %p103 = scmp.eq.s32.totalorder %s40, 2
      %p104 = por %p102, %p103
      %p105 = scmp.ne.s32.totalorder %s94, %s95
      %p106 = scmp.eq.s32.totalorder %s40, 0
      %p107 = por %p105, %p106
      %p108 = scmp.ne.s32.totalorder %s94, %s95
      %p109 = scmp.eq.s32.totalorder %s41, 2
      %p110 = por %p108, %p109
      %p112 = scmp.ne.s32.totalorder %s95, %s111
      %p113 = scmp.eq.s32.totalorder %s41, 0
      %p114 = por %p112, %p113
      %s115 = ssub.s32 %s42, %s54
      %p116 = scmp.eq.s32.totalorder %s115, 0
      %s118 = sadd.s32 %s117, 1
      %s119 = scalar_select %p116, %s117, %s118
      %p122 = pneg %p116
      %p123 = scmp.eq.s32.totalorder %s35, 2
      %p124 = por %p122, %p123
      %p125 = scmp.ne.s32.totalorder %s117, %s120
      %p126 = scmp.eq.s32.totalorder %s35, 0
      %p127 = por %p125, %p126
      %p128 = scmp.ne.s32.totalorder %s117, %s120
      %p129 = scmp.eq.s32.totalorder %s40, 2
      %p130 = por %p128, %p129
      %p131 = scmp.ne.s32.totalorder %s120, %s121
      %p132 = scmp.eq.s32.totalorder %s40, 0
      %p133 = por %p131, %p132
      %p134 = scmp.ne.s32.totalorder %s120, %s121
      %p135 = scmp.eq.s32.totalorder %s41, 2
      %p136 = por %p134, %p135
      %p138 = scmp.ne.s32.totalorder %s121, %s137
      %p139 = scmp.eq.s32.totalorder %s41, 0
      %p140 = por %p138, %p139
      %p141 = scmp.le.s32.totalorder 1, %s35
      %p142 = scmp.lt.s32.totalorder %s35, 4
      %p143 = pnand %p141, %p142
      %p144 = pneg %p143
      // Predicated region
      $region9: #{yolov3_loss.1} parent=5 // pred_check
        _
      $region10: #{yolov3_loss.1} parent=5 // pred_check_branch
        %146 = sbr.rel (%p143) target = $region12
      $region11: #{yolov3_loss.1} parent=5 // pred_region
        %s147 = ssub.s32 %s35, 1
      $region12: #{yolov3_loss.1} parent=5 // pred_fallthru
        _
      %p148 = scmp.lt.s32.totalorder %s35, 3
      // Predicated region
      $region13: #{yolov3_loss.1} parent=5 // pred_check
        %p149 = pneg %p148
      $region14: #{yolov3_loss.1} parent=5 // pred_check_branch
        %151 = sbr.rel (%p149) target = $region16
      $region15: #{yolov3_loss.1} parent=5 // pred_region
        // Predicated region
        $region17: #{yolov3_loss.1} parent=15 // pred_check
          %p152 = pneg %p71
        $region18: #{yolov3_loss.1} parent=15 // pred_check_branch
          %154 = sbr.rel (%p152) target = $region20
        $region19: #{yolov3_loss.1} parent=15 // pred_region
          %s155 = sand.u32 %s61, 1
          %s156 = sand.u32 %s61, 1
          %s157 = smul.addr %s156, 72
          %s158 = scalar_lea.vmem [#allocation11], %s157
          %s159 = smul.u32 %s42, 3
          %s160 = sadd.s32 %s159, %s43
          %s161 = smul.addr %s160, 8
          %s162 = scalar_lea.vmem %s4, %s161
          // Predicated region
          $region21: #{yolov3_loss.1} parent=19 // pred_check
            _
          $region22: #{yolov3_loss.1} parent=19 // pred_check_branch
            %164 = sbr.rel (0) target = $region24
          $region23: #{yolov3_loss.1} parent=19 // pred_region
            // Predicated region
            $region25: #{yolov3_loss.1} parent=23 // pred_check
              _
            $region26: #{yolov3_loss.1} parent=23 // pred_check_branch
              %166 = sbr.rel (0) target = $region28
            $region27: #{yolov3_loss.1} parent=23 // pred_region
              // Predicated region
              $region40: #{yolov3_loss.1} parent=27 // pred_check
                _
              $region41: #{yolov3_loss.1} parent=27 // pred_check_branch
                %198 = sbr.rel (0) target = $region43
              $region42: #{yolov3_loss.1} parent=27 // pred_region
                loop: start=0, step=1, limit=1
                $region44: #{yolov3_loss.1} parent=42 // loop_pre_header
                  _
                $region45: #{yolov3_loss.1} parent=42 // loop_header
                  %s200 = sphi 0, %s204
                  %p201 = scmp.ge.s32.totalorder %s200, 1
                  %s205 = sphi %s162, %s162
                  %s206 = sphi %s158, %s158
                $region46: #{yolov3_loss.1} parent=42 // loop_header_branch
                  %203 = sbr.rel (%p201) target = $region50
                $region47: #{yolov3_loss.1} parent=42 // loop_body
                  %v207 = vld [vmem:[%s205] sm:$0xff]
                  %208 = vst [vmem:[%s206] sm:$0xff] %v207
                  %v209 = vld [vmem:[%s205 + $0x18] sm:$0xff]
                  %210 = vst [vmem:[%s206 + $0x8] sm:$0xff] %v209
                  %v211 = vld [vmem:[%s205 + $0x30] sm:$0xff]
                  %212 = vst [vmem:[%s206 + $0x10] sm:$0xff] %v211
                  %v213 = vld [vmem:[%s205 + $0x48] sm:$0xff]
                  %214 = vst [vmem:[%s206 + $0x18] sm:$0xff] %v213
                  %v215 = vld [vmem:[%s205 + $0x60] sm:$0xff]
                  %216 = vst [vmem:[%s206 + $0x20] sm:$0xff] %v215
                  %v217 = vld [vmem:[%s205 + $0x78] sm:$0xff]
                  %218 = vst [vmem:[%s206 + $0x28] sm:$0xff] %v217
                  %v219 = vld [vmem:[%s205 + $0x90] sm:$0xff]
                  %220 = vst [vmem:[%s206 + $0x30] sm:$0xff] %v219
                  %v221 = vld [vmem:[%s205 + $0xa8] sm:$0xff]
                  %222 = vst [vmem:[%s206 + $0x38] sm:$0xff] %v221
                  %v223 = vld [vmem:[%s205 + $0xc0] sm:$0xff]
                  %224 = vst [vmem:[%s206 + $0x40] sm:$0xff] %v223
                $region48: #{yolov3_loss.1} parent=42 // loop_footer
                  %s204 = sadd.s32 1, %s200
                $region49: #{yolov3_loss.1} parent=42 // loop_footer_branch
                  %199 = sbr.rel target = $region45
                $region50: #{yolov3_loss.1} parent=42 // loop_exit
                  _
              $region43: #{yolov3_loss.1} parent=27 // pred_fallthru
                _
              // Predicated region
              $region51: #{yolov3_loss.1} parent=27 // pred_check
                _
              $region52: #{yolov3_loss.1} parent=27 // pred_check_branch
                %226 = sbr.rel target = $region54
              $region53: #{yolov3_loss.1} parent=27 // pred_region
                _
              $region54: #{yolov3_loss.1} parent=27 // pred_fallthru
                _
            $region28: #{yolov3_loss.1} parent=23 // pred_fallthru
              _
            // Predicated region
            $region29: #{yolov3_loss.1} parent=23 // pred_check
              _
            $region30: #{yolov3_loss.1} parent=23 // pred_check_branch
              %168 = sbr.rel target = $region32
            $region31: #{yolov3_loss.1} parent=23 // pred_region
              %s170 = ssub.s32 256, 1
              loop: start=0, step=1, limit=1
              $region33: #{yolov3_loss.1} parent=31 // loop_pre_header
                _
              $region34: #{yolov3_loss.1} parent=31 // loop_header
                %s172 = sphi 0, %s176
                %p173 = scmp.ge.s32.totalorder %s172, 1
                %s177 = sphi %s162, %s162
                %s178 = sphi %s158, %s158
              $region35: #{yolov3_loss.1} parent=31 // loop_header_branch
                %175 = sbr.rel (%p173) target = $region39
              $region36: #{yolov3_loss.1} parent=31 // loop_body
                %v179 = vld [vmem:[%s177] sm:%s170]
                %180 = vst [vmem:[%s178] sm:%s170] %v179
                %v181 = vld [vmem:[%s177 + $0x18] sm:%s170]
                %182 = vst [vmem:[%s178 + $0x8] sm:%s170] %v181
                %v183 = vld [vmem:[%s177 + $0x30] sm:%s170]
                %184 = vst [vmem:[%s178 + $0x10] sm:%s170] %v183
                %v185 = vld [vmem:[%s177 + $0x48] sm:%s170]
                %186 = vst [vmem:[%s178 + $0x18] sm:%s170] %v185
                %v187 = vld [vmem:[%s177 + $0x60] sm:%s170]
                %188 = vst [vmem:[%s178 + $0x20] sm:%s170] %v187
                %v189 = vld [vmem:[%s177 + $0x78] sm:%s170]
                %190 = vst [vmem:[%s178 + $0x28] sm:%s170] %v189
                %v191 = vld [vmem:[%s177 + $0x90] sm:%s170]
                %192 = vst [vmem:[%s178 + $0x30] sm:%s170] %v191
                %v193 = vld [vmem:[%s177 + $0xa8] sm:%s170]
                %194 = vst [vmem:[%s178 + $0x38] sm:%s170] %v193
                %v195 = vld [vmem:[%s177 + $0xc0] sm:%s170]
                %196 = vst [vmem:[%s178 + $0x40] sm:%s170] %v195
              $region37: #{yolov3_loss.1} parent=31 // loop_footer
                %s176 = sadd.s32 1, %s172
              $region38: #{yolov3_loss.1} parent=31 // loop_footer_branch
                %171 = sbr.rel target = $region34
              $region39: #{yolov3_loss.1} parent=31 // loop_exit
                _
            $region32: #{yolov3_loss.1} parent=23 // pred_fallthru
              _
          $region24: #{yolov3_loss.1} parent=19 // pred_fallthru
            _
          %227 = vnop
        $region20: #{yolov3_loss.1} parent=15 // pred_fallthru
          _
        // Predicated region
        $region55: #{yolov3_loss.1} parent=15 // pred_check
          %p228 = pneg %p101
        $region56: #{yolov3_loss.1} parent=15 // pred_check_branch
          %230 = sbr.rel (%p228) target = $region58
        $region57: #{yolov3_loss.1} parent=15 // pred_region
          %s231 = sand.u32 %s91, 1
          %s232 = sand.u32 %s91, 1
          %s233 = smul.addr %s232, 48
          %s234 = scalar_lea.vmem [#allocation12], %s233
          %s235 = smul.u32 %s42, 3
          %s236 = sadd.s32 %s235, %s43
          %s237 = smul.addr %s236, 8
          %s238 = scalar_lea.vmem %s5, %s237
          // Predicated region
          $region59: #{yolov3_loss.1} parent=57 // pred_check
            _
          $region60: #{yolov3_loss.1} parent=57 // pred_check_branch
            %240 = sbr.rel (0) target = $region62
          $region61: #{yolov3_loss.1} parent=57 // pred_region
            // Predicated region
            $region63: #{yolov3_loss.1} parent=61 // pred_check
              _
            $region64: #{yolov3_loss.1} parent=61 // pred_check_branch
              %242 = sbr.rel (0) target = $region66
            $region65: #{yolov3_loss.1} parent=61 // pred_region
              // Predicated region
              $region78: #{yolov3_loss.1} parent=65 // pred_check
                _
              $region79: #{yolov3_loss.1} parent=65 // pred_check_branch
                %268 = sbr.rel (0) target = $region81
              $region80: #{yolov3_loss.1} parent=65 // pred_region
                loop: start=0, step=1, limit=1
                $region82: #{yolov3_loss.1} parent=80 // loop_pre_header
                  _
                $region83: #{yolov3_loss.1} parent=80 // loop_header
                  %s270 = sphi 0, %s274
                  %p271 = scmp.ge.s32.totalorder %s270, 1
                  %s275 = sphi %s238, %s238
                  %s276 = sphi %s234, %s234
                $region84: #{yolov3_loss.1} parent=80 // loop_header_branch
                  %273 = sbr.rel (%p271) target = $region88
                $region85: #{yolov3_loss.1} parent=80 // loop_body
                  %v277 = vld [vmem:[%s275] sm:$0xff]
                  %278 = vst [vmem:[%s276] sm:$0xff] %v277
                  %v279 = vld [vmem:[%s275 + $0x18] sm:$0xff]
                  %280 = vst [vmem:[%s276 + $0x8] sm:$0xff] %v279
                  %v281 = vld [vmem:[%s275 + $0x30] sm:$0xff]
                  %282 = vst [vmem:[%s276 + $0x10] sm:$0xff] %v281
                  %v283 = vld [vmem:[%s275 + $0x48] sm:$0xff]
                  %284 = vst [vmem:[%s276 + $0x18] sm:$0xff] %v283
                  %v285 = vld [vmem:[%s275 + $0x60] sm:$0xff]
                  %286 = vst [vmem:[%s276 + $0x20] sm:$0xff] %v285
                  %v287 = vld [vmem:[%s275 + $0x78] sm:$0xff]
                  %288 = vst [vmem:[%s276 + $0x28] sm:$0xff] %v287
                $region86: #{yolov3_loss.1} parent=80 // loop_footer
                  %s274 = sadd.s32 1, %s270
                $region87: #{yolov3_loss.1} parent=80 // loop_footer_branch
                  %269 = sbr.rel target = $region83
                $region88: #{yolov3_loss.1} parent=80 // loop_exit
                  _
              $region81: #{yolov3_loss.1} parent=65 // pred_fallthru
                _
              // Predicated region
              $region89: #{yolov3_loss.1} parent=65 // pred_check
                _
              $region90: #{yolov3_loss.1} parent=65 // pred_check_branch
                %290 = sbr.rel target = $region92
              $region91: #{yolov3_loss.1} parent=65 // pred_region
                _
              $region92: #{yolov3_loss.1} parent=65 // pred_fallthru
                _
            $region66: #{yolov3_loss.1} parent=61 // pred_fallthru
              _
            // Predicated region
            $region67: #{yolov3_loss.1} parent=61 // pred_check
              _
            $region68: #{yolov3_loss.1} parent=61 // pred_check_branch
              %244 = sbr.rel target = $region70
            $region69: #{yolov3_loss.1} parent=61 // pred_region
              %s246 = ssub.s32 256, 1
              loop: start=0, step=1, limit=1
              $region71: #{yolov3_loss.1} parent=69 // loop_pre_header
                _
              $region72: #{yolov3_loss.1} parent=69 // loop_header
                %s248 = sphi 0, %s252
                %p249 = scmp.ge.s32.totalorder %s248, 1
                %s253 = sphi %s238, %s238
                %s254 = sphi %s234, %s234
              $region73: #{yolov3_loss.1} parent=69 // loop_header_branch
                %251 = sbr.rel (%p249) target = $region77
              $region74: #{yolov3_loss.1} parent=69 // loop_body
                %v255 = vld [vmem:[%s253] sm:%s246]
                %256 = vst [vmem:[%s254] sm:%s246] %v255
                %v257 = vld [vmem:[%s253 + $0x18] sm:%s246]
                %258 = vst [vmem:[%s254 + $0x8] sm:%s246] %v257
                %v259 = vld [vmem:[%s253 + $0x30] sm:%s246]
                %260 = vst [vmem:[%s254 + $0x10] sm:%s246] %v259
                %v261 = vld [vmem:[%s253 + $0x48] sm:%s246]
                %262 = vst [vmem:[%s254 + $0x18] sm:%s246] %v261
                %v263 = vld [vmem:[%s253 + $0x60] sm:%s246]
                %264 = vst [vmem:[%s254 + $0x20] sm:%s246] %v263
                %v265 = vld [vmem:[%s253 + $0x78] sm:%s246]
                %266 = vst [vmem:[%s254 + $0x28] sm:%s246] %v265
              $region75: #{yolov3_loss.1} parent=69 // loop_footer
                %s252 = sadd.s32 1, %s248
              $region76: #{yolov3_loss.1} parent=69 // loop_footer_branch
                %247 = sbr.rel target = $region72
              $region77: #{yolov3_loss.1} parent=69 // loop_exit
                _
            $region70: #{yolov3_loss.1} parent=61 // pred_fallthru
              _
          $region62: #{yolov3_loss.1} parent=57 // pred_fallthru
            _
          %291 = vnop
        $region58: #{yolov3_loss.1} parent=15 // pred_fallthru
          _
      $region16: #{yolov3_loss.1} parent=5 // pred_fallthru
        _
      %p292 = scmp.le.s32.totalorder 1, %s35
      %p293 = scmp.lt.s32.totalorder %s35, 4
      %p294 = pnand %p292, %p293
      %p295 = pneg %p294
      // Predicated region
      $region93: #{yolov3_loss.1} parent=5 // pred_check
        _
      $region94: #{yolov3_loss.1} parent=5 // pred_check_branch
        %297 = sbr.rel (%p294) target = $region96
      $region95: #{yolov3_loss.1} parent=5 // pred_region
        %s298 = ssub.s32 %s35, 1
        %s299 = sand.u32 %s64, 1
        %s300 = sand.u32 %s64, 1
        %s301 = smul.addr %s300, 72
        %s302 = scalar_lea.vmem [#allocation11], %s301
        // Predicated region
        $region97: #{yolov3_loss.1} parent=95 // pred_check
          %p303 = pneg %p77
        $region98: #{yolov3_loss.1} parent=95 // pred_check_branch
          %305 = sbr.rel (%p303) target = $region100
        $region99: #{yolov3_loss.1} parent=95 // pred_region
          _
        $region100: #{yolov3_loss.1} parent=95 // pred_fallthru
          _
        %s306 = sand.u32 %s94, 1
        %s307 = sand.u32 %s94, 1
        %s308 = smul.addr %s307, 48
        %s309 = scalar_lea.vmem [#allocation12], %s308
        // Predicated region
        $region101: #{yolov3_loss.1} parent=95 // pred_check
          %p310 = pneg %p107
        $region102: #{yolov3_loss.1} parent=95 // pred_check_branch
          %312 = sbr.rel (%p310) target = $region104
        $region103: #{yolov3_loss.1} parent=95 // pred_region
          _
        $region104: #{yolov3_loss.1} parent=95 // pred_fallthru
          _
        %s313 = sand.u32 %s64, 1
        %s314 = sand.u32 %s64, 1
        %s315 = smul.addr %s314, 72
        %s316 = scalar_lea.vmem [#allocation11], %s315
        %p317 = pneg %p77
        %p318 = pneg %p74
        %s319 = sand.u32 %s94, 1
        %s320 = sand.u32 %s94, 1
        %s321 = smul.addr %s320, 48
        %s322 = scalar_lea.vmem [#allocation12], %s321
        %p323 = pneg %p107
        %p324 = pneg %p104
        %p325 = pneg %p133
        %p326 = pneg %p130
        %p327 = scmp.lt.s32.totalorder %s44, 0
        %s328 = scalar_select %p327, %s44, 0
        %s329 = smul.addr %s328, 4
        %s330 = smul.addr %s329, 8
        %s331 = scalar_lea.vmem %s6, %s330
        %s332 = smul.u32 %s44, 3
        %s333 = sadd.s32 %s332, %s45
        %s334 = smul.u32 %s44, 3
        %s335 = sadd.s32 %s334, %s45
        %p336 = scmp.lt.s32.totalorder %s44, 0
        %s337 = scalar_select %p336, %s44, 0
        %s338 = smul.addr %s337, 4
        %s339 = smul.addr %s338, 8
        %s340 = scalar_lea.vmem %s6, %s339
        %p341 = scmp.eq.s32.totalorder %s45, 0
        // Predicated region
        $region105: #{yolov3_loss.1} parent=95 // pred_check
          %p342 = pneg %p341
        $region106: #{yolov3_loss.1} parent=95 // pred_check_branch
          %344 = sbr.rel (%p342) target = $region108
        $region107: #{yolov3_loss.1} parent=95 // pred_region
          %345 = vst [vmem:[#allocation2] sm:$0xff] 0.0
          %346 = vst [vmem:[#allocation3] sm:$0xff] 0.0
          %347 = vst [vmem:[#allocation4] sm:$0xff] 0.0
          %348 = vst [vmem:[#allocation5] sm:$0xff] 0.0
        $region108: #{yolov3_loss.1} parent=95 // pred_fallthru
          _
        %s349 = smul.u32 %s44, 3
        %s350 = sadd.s32 %s349, %s45
        %s351 = sld [smem:[#allocation7 + %s350]]
        %s352 = sld [smem:[#allocation8 + %s350]]
        %s353 = sld [smem:[#allocation9 + %s350]]
        %s354 = sld [smem:[#allocation10 + %s350]]
        %v355 = vld [vmem:[%s309] sm:$0xff]
        %vm356 = vcmp.eq.f32.partialorder %v355, 1.0
        %vm357 = vcmp.eq.f32.partialorder %v355, 0.0
        %v358 = vld [vmem:[%s302] sm:$0xff]
        %v359 = vand.u32 2147483647, %v358
        %v360 = vsub.f32 0.0, %v359
        %v361 = vmul.f32 %v360, 1.442695
        %v362 = vpow.pop %v361
        %v363 = vadd.f32 %v362, 1.0
        %v364 = vrcp.pop %v363
        %vm365 = vcmp.ge.f32.partialorder %v358, 0.0
        %v366 = vmul.f32 %v362, %v364
        %v367 = vsel %vm365, %v364, %v366
        %v368 = vmax.f32 %v358, 0.0
        %v369 = vmul.f32 %v358, %v355
        %v370 = vsub.f32 %v368, %v369
        %v371 = vadd.f32 %v362, 1.0
        %v372 = vlog2.pop %v371
        %v373 = vmul.f32 %v372, 0.6931472
        %v374 = vmul.f32 -0.5, %v362
        %v375 = vadd.f32 %v374, 1.0
        %v376 = vmul.f32 %v375, %v362
        %v377 = vand.u32 2147483647, %v362
        %vm378 = vcmp.lt.f32.partialorder %v377, 0.0004427343
        %v379 = vsel %vm378, %v376, %v373
        %v380 = vadd.f32 %v370, %v379
        %v381 = vld [vmem:[#allocation2] sm:$0xff]
        %v382 = vsel %vm357, %v380, 0.0
        %v383 = vadd.f32 %v381, %v382
        %384 = vst [vmem:[#allocation2] sm:$0xff] %v383
        %s385 = sadd.s32 0, 8
        %s386 = scalar_lea.vmem %s302, %s385 [#allocation11]
        %v387 = vld [vmem:[%s386] sm:$0xff]
        %v388 = vxor.u32 %v387, 2147483648
        %v389 = vmul.f32 %v388, 1.442695
        %v390 = vpow.pop %v389
        %v391 = vadd.f32 %v390, 1.0
        %v392 = vrcp.pop %v391
        %v393 = vmul.f32 %v391, %v392
        %v394 = vsub.f32 1.0, %v393
        %v395 = vmul.f32 %v392, %v394
        %v396 = vadd.f32 %v392, %v395
        %vm397 = vweird.f32 %v391
        %vm398 = vweird.f32 %v392
        %vm399 = vmor %vm397, %vm398
        %v400 = vsel %vm399, %v392, %v396
        %v401 = vand.u32 2147483647, %v391
        %vm402 = vcmp.eq.f32.partialorder %v401, 8.507059e+37
        %v403 = vand.u32 %v391, 2147483648
        %v404 = vor.u32 1.1754944e-38, %v403
        %v405 = vsel %vm402, %v404, %v400
        %v406 = vmul.f32 1.0, %v405
        %s407 = sadd.s32 0, 16
        %s408 = scalar_lea.vmem %s302, %s407 [#allocation11]
        %v409 = vld [vmem:[%s408] sm:$0xff]
        %v410 = vxor.u32 %v409, 2147483648
        %v411 = vmul.f32 %v410, 1.442695
        %v412 = vpow.pop %v411
        %v413 = vadd.f32 %v412, 1.0
        %v414 = vrcp.pop %v413
        %v415 = vmul.f32 %v413, %v414
        %v416 = vsub.f32 1.0, %v415
        %v417 = vmul.f32 %v414, %v416
        %v418 = vadd.f32 %v414, %v417
        %vm419 = vweird.f32 %v413
        %vm420 = vweird.f32 %v414
        %vm421 = vmor %vm419, %vm420
        %v422 = vsel %vm421, %v414, %v418
        %v423 = vand.u32 2147483647, %v413
        %vm424 = vcmp.eq.f32.partialorder %v423, 8.507059e+37
        %v425 = vand.u32 %v413, 2147483648
        %v426 = vor.u32 1.1754944e-38, %v425
        %v427 = vsel %vm424, %v426, %v422
        %v428 = vmul.f32 1.0, %v427
        %s429 = sadd.s32 0, 24
        %s430 = scalar_lea.vmem %s302, %s429 [#allocation11]
        %v431 = vld [vmem:[%s430] sm:$0xff]
        %s432 = sadd.s32 0, 32
        %s433 = scalar_lea.vmem %s302, %s432 [#allocation11]
        %v434 = vld [vmem:[%s433] sm:$0xff]
        %v435 = vmul.f32 %v431, 1.442695
        %v436 = vpow.pop %v435
        %v437 = vstv %s351
        %v438 = vmul.f32 %v436, %v437
        %v439 = vmul.f32 %v434, 1.442695
        %v440 = vpow.pop %v439
        %v441 = vstv %s352
        %v442 = vmul.f32 %v440, %v441
        %s443 = scalar_lea.vmem %s309, %s385 [#allocation12]
        %v444 = vld [vmem:[%s443] sm:$0xff]
        %s445 = scalar_lea.vmem %s309, %s407 [#allocation12]
        %v446 = vld [vmem:[%s445] sm:$0xff]
        %s447 = scalar_lea.vmem %s309, %s429 [#allocation12]
        %v448 = vld [vmem:[%s447] sm:$0xff]
        %s449 = scalar_lea.vmem %s309, %s432 [#allocation12]
        %v450 = vld [vmem:[%s449] sm:$0xff]
        %v451 = vmul.f32 %v438, 0.5
        %v452 = vsub.f32 %v406, %v451
        %v453 = vadd.f32 %v406, %v451
        %v454 = vmul.f32 %v442, 0.5
        %v455 = vsub.f32 %v428, %v454
        %v456 = vadd.f32 %v428, %v454
        %v457 = vmul.f32 %v448, 0.5
        %v458 = vsub.f32 %v444, %v457
        %v459 = vadd.f32 %v444, %v457
        %v460 = vmul.f32 %v450, 0.5
        %v461 = vsub.f32 %v446, %v460
        %v462 = vadd.f32 %v446, %v460
        %v463 = vmin.f32 %v453, %v459
        %v464 = vmax.f32 %v452, %v458
        %v465 = vsub.f32 %v463, %v464
        %v466 = vmax.f32 %v465, 0.0
        %v467 = vmin.f32 %v456, %v462
        %v468 = vmax.f32 %v455, %v461
        %v469 = vsub.f32 %v467, %v468
        %v470 = vmax.f32 %v469, 0.0
        %v471 = vmul.f32 %v466, %v470
        %v472 = vsub.f32 %v453, %v452
        %v473 = vsub.f32 %v456, %v455
        %v474 = vmul.f32 %v472, %v473
        %v475 = vand.u32 2147483647, %v474
        %v476 = vsub.f32 %v459, %v458
        %v477 = vsub.f32 %v462, %v461
        %v478 = vmul.f32 %v476, %v477
        %v479 = vand.u32 2147483647, %v478
        %v480 = vadd.f32 %v475, %v479
        %v481 = vsub.f32 %v480, %v471
        %v482 = vadd.f32 %v481, 1e-06
        %v483 = vrcp.pop %v482
        %v484 = vmul.f32 %v471, %v483
        %v485 = vmul.f32 %v484, %v355
        %v486 = vsub.f32 %v367, %v485
        %v487 = vmul.f32 %v486, %v486
        %v488 = vstv %s353
        %v489 = vmul.f32 %v448, %v488
        %v490 = vadd.f32 %v489, 1e-06
        %v491 = vlog2.pop %v490
        %v492 = vmul.f32 %v491, 0.6931472
        %v493 = vstv %s354
        %v494 = vmul.f32 %v450, %v493
        %v495 = vadd.f32 %v494, 1e-06
        %v496 = vlog2.pop %v495
        %v497 = vmul.f32 %v496, 0.6931472
        %v498 = vsub.f32 %v406, %v444
        %v499 = vmul.f32 %v498, %v498
        %v500 = vsub.f32 %v428, %v446
        %v501 = vmul.f32 %v500, %v500
        %v502 = vadd.f32 %v499, %v501
        %v503 = vsub.f32 %v431, %v492
        %v504 = vmul.f32 %v503, %v503
        %v505 = vadd.f32 %v502, %v504
        %v506 = vsub.f32 %v434, %v497
        %v507 = vmul.f32 %v506, %v506
        %v508 = vadd.f32 %v505, %v507
        %v509 = vld [vmem:[#allocation3] sm:$0xff]
        %v510 = vmul.f32 %v508, 10.0
        %v511 = vadd.f32 %v510, %v487
        %v512 = vsel %vm356, %v511, 0.0
        %v513 = vadd.f32 %v509, %v512
        %514 = vst [vmem:[#allocation3] sm:$0xff] %v513
        %s515 = sadd.s32 0, 40
        %s516 = scalar_lea.vmem %s309, %s515 [#allocation12]
        %v517 = vld [vmem:[%s516] sm:$0xff]
        %v518 = vcvt.f32.s32.to.zero.pseudo %v517
        %s519 = scalar_lea.vmem %s302, %s515 [#allocation11]
        %v520 = vld [vmem:[%s519] sm:$0xff]
        %s521 = sadd.s32 0, 48
        %s522 = scalar_lea.vmem %s302, %s521 [#allocation11]
        %v523 = vld [vmem:[%s522] sm:$0xff]
        %v524 = vmax.f32 %v520, %v523
        %s525 = sadd.s32 0, 56
        %s526 = scalar_lea.vmem %s302, %s525 [#allocation11]
        %v527 = vld [vmem:[%s526] sm:$0xff]
        %v528 = vmax.f32 %v524, %v527
        %s529 = sadd.s32 0, 64
        %s530 = scalar_lea.vmem %s302, %s529 [#allocation11]
        %v531 = vld [vmem:[%s530] sm:$0xff]
        %v532 = vmax.f32 %v528, %v531
        %v533 = vsub.f32 %v520, %v532
        %v534 = vmul.f32 %v533, 1.442695
        %v535 = vpow.pop %v534
        %v536 = vadd.f32 %v535, 0.0
        %vm537 = vcmp.eq.s32.totalorder %v518, 0
        %v538 = vsel %vm537, %v520, 0.0
        %v539 = vsub.f32 %v523, %v532
        %v540 = vmul.f32 %v539, 1.442695
        %v541 = vpow.pop %v540
        %v542 = vadd.f32 %v536, %v541
        %vm543 = vcmp.eq.s32.totalorder %v518, 1
        %v544 = vsel %vm543, %v523, %v538
        %v545 = vsub.f32 %v527, %v532
        %v546 = vmul.f32 %v545, 1.442695
        %v547 = vpow.pop %v546
        %v548 = vadd.f32 %v542, %v547
        %vm549 = vcmp.eq.s32.totalorder %v518, 2
        %v550 = vsel %vm549, %v527, %v544
        %v551 = vsub.f32 %v531, %v532
        %v552 = vmul.f32 %v551, 1.442695
        %v553 = vpow.pop %v552
        %v554 = vadd.f32 %v548, %v553
        %vm555 = vcmp.eq.s32.totalorder %v518, 3
        %v556 = vsel %vm555, %v531, %v550
        %v557 = vlog2.pop %v554
        %v558 = vmul.f32 %v557, 0.6931472
        %v559 = vadd.f32 %v532, %v558
        %v560 = vsub.f32 %v559, %v556
        %v561 = vld [vmem:[#allocation4] sm:$0xff]
        %v562 = vsel %vm356, %v560, 0.0
        %v563 = vadd.f32 %v561, %v562
        %564 = vst [vmem:[#allocation4] sm:$0xff] %v563
        %v565 = vld [vmem:[#allocation5] sm:$0xff]
        %v566 = vsel %vm356, 1.0, 0.0
        %v567 = vadd.f32 %v565, %v566
        %568 = vst [vmem:[#allocation5] sm:$0xff] %v567
        %p569 = scmp.eq.s32.totalorder %s45, 2
        // Predicated region
        $region109: #{yolov3_loss.1} parent=95 // pred_check
          %p570 = pneg %p569
        $region110: #{yolov3_loss.1} parent=95 // pred_check_branch
          %572 = sbr.rel (%p570) target = $region112
        $region111: #{yolov3_loss.1} parent=95 // pred_region
          %v573 = vld [vmem:[#allocation2] sm:$0xff]
          %574 = vst [vmem:[%s340] sm:$0xff] %v573
          %v575 = vld [vmem:[#allocation3] sm:$0xff]
          %s576 = scalar_lea.vmem %s340, 8
          %577 = vst [vmem:[%s576] sm:$0xff] %v575
          %v578 = vld [vmem:[#allocation4] sm:$0xff]
          %s579 = scalar_lea.vmem %s340, 16
          %580 = vst [vmem:[%s579] sm:$0xff] %v578
          %v581 = vld [vmem:[#allocation5] sm:$0xff]
          %s582 = scalar_lea.vmem %s340, 24
          %583 = vst [vmem:[%s582] sm:$0xff] %v581
        $region112: #{yolov3_loss.1} parent=95 // pred_fallthru
          _
        %p584 = scmp.lt.s32.totalorder %s44, 0
        %s585 = scalar_select %p584, %s44, 0
        %s586 = smul.addr %s585, 4
        %s587 = smul.addr %s586, 8
        %s588 = scalar_lea.vmem %s6, %s587
        // Predicated region
        $region113: #{yolov3_loss.1} parent=95 // pred_check
          %p589 = pneg %p130
        $region114: #{yolov3_loss.1} parent=95 // pred_check_branch
          %591 = sbr.rel (%p589) target = $region116
        $region115: #{yolov3_loss.1} parent=95 // pred_region
          _
        $region116: #{yolov3_loss.1} parent=95 // pred_fallthru
          _
        // Predicated region
        $region117: #{yolov3_loss.1} parent=95 // pred_check
          %p592 = pneg %p130
        $region118: #{yolov3_loss.1} parent=95 // pred_check_branch
          %594 = sbr.rel (%p592) target = $region120
        $region119: #{yolov3_loss.1} parent=95 // pred_region
          %p595 = scmp.lt.s32.totalorder %s44, 0
          %s596 = scalar_select %p595, %s44, 0
          %s597 = smul.addr %s596, 4
          %s598 = smul.addr %s597, 8
          %s599 = scalar_lea.vmem %s6, %s598
        $region120: #{yolov3_loss.1} parent=95 // pred_fallthru
          _
      $region96: #{yolov3_loss.1} parent=5 // pred_fallthru
        _
      %p600 = scmp.le.s32.totalorder 2, %s35
      // Predicated region
      $region121: #{yolov3_loss.1} parent=5 // pred_check
        %p601 = pneg %p600
      $region122: #{yolov3_loss.1} parent=5 // pred_check_branch
        %603 = sbr.rel (%p601) target = $region124
      $region123: #{yolov3_loss.1} parent=5 // pred_region
        %s604 = ssub.s32 %s35, 2
      $region124: #{yolov3_loss.1} parent=5 // pred_fallthru
        _
    $region6: #{yolov3_loss.1} parent=1 // loop_footer
      %s39 = sadd.s32 1, %s35
    $region7: #{yolov3_loss.1} parent=1 // loop_footer_branch
      %34 = sbr.rel target = $region3
    $region8: #{yolov3_loss.1} parent=1 // loop_exit
      _

</llo_original>
